<compile_context>
chip_gen: v6e
topology: v6e:2x2x1
jax: 0.10.0
libtpu: 0.0.40
codegen_flags: <defaults>
</compile_context>

<pallas_src>
import functools

import jax
import jax.numpy as jnp
from jax.experimental import pallas as pl
from jax.experimental.pallas import tpu as pltpu


# --------------------------------------------------------------------------- #
# Generation detection / VMEM budgeting
# --------------------------------------------------------------------------- #

def _device_kind():
    try:
        return (jax.devices()[0].device_kind or "").lower()
    except Exception:  # pragma: no cover
        return ""


def _vmem_physical_bytes(kind):
    # v7x has 64 MiB of VMEM per TensorCore; v5e/v6e (and v5p) have 128 MiB.
    if "v7" in kind:
        return 64 * 1024 * 1024
    return 128 * 1024 * 1024


def _vmem_estimate(thw, *, cin, v, k, o, materialize_value, out_bytes):
    """Rough per-pass VMEM footprint (bytes) for a given HW tile size."""
    bf16, f32 = 2, 4
    # Pass 1: double-buffered bf16 x tile, (double-buffered) bf16 weights,
    # one live f32 projection temp, bf16 value/key copies, tiny sim accumulator.
    p1 = (2 * cin * thw * bf16
          + 2 * (v + k) * cin * bf16
          + max(v, k) * thw * f32
          + (v + k) * thw * bf16
          + 4 * v * k * f32)
    if materialize_value:
        p1 += 2 * v * thw * bf16                      # value output tiles
    # Pass 2.
    if materialize_value:
        p2 = (2 * v * thw * bf16                      # value input tiles
              + 2 * o * thw * out_bytes               # output tiles
              + k * thw * f32                         # ctx temp
              + 2 * o * k * bf16 + 4 * v * k)
    else:
        p2 = (2 * cin * thw * bf16                    # x input tiles
              + 2 * o * thw * out_bytes               # output tiles
              + v * thw * (f32 + bf16)                # value temp + bf16 copy
              + k * thw * f32                         # ctx temp
              + 2 * (v * cin + o * k) * bf16 + 4 * v * k)
    return max(p1, p2)


def _pick_hw_tile(hw, budget, est):
    candidates = [t for t in (8192, 4096, 2048, 1024, 512, 256, 128) if hw % t == 0]
    for t in candidates:
        if est(t) <= budget:
            return t
    if candidates:
        return candidates[-1]
    # TODO(synk): HW not a multiple of 128 — pad HW or use pl.BoundedSlice; falls back to one block.
    return hw


# --------------------------------------------------------------------------- #
# Kernels
# --------------------------------------------------------------------------- #

def _sim_kernel(x_ref, wvk_ref, bvk_ref, p_ref, *rest, v_ch, sm_scale):
    """Pass 1: accumulate sim = value @ key^T over HW tiles; softmax at last tile.

    Optionally (materialize_value path) also stores the bf16 value activation
    as a lane-dense (V, thw) tile for pass 2 to consume.
    """
    sim_acc = rest[-1]
    val_ref = rest[0] if len(rest) == 2 else None
    t = pl.program_id(1)

    @pl.when(t == 0)
    def _():
        sim_acc[...] = jnp.zeros_like(sim_acc)

    x = x_ref[0]                                            # (Cin, THW) bf16
    w = wvk_ref[...]                                        # (V+K, Cin) bf16 (pre-cast)
    b = bvk_ref[...]                                        # (V+K, 1)   f32
    # Split the fused projection into two matmuls so only one (C, THW) f32
    # temporary is live at a time (halves peak temp VMEM; matters on v7x).
    value = jnp.dot(w[:v_ch], x, preferred_element_type=jnp.float32) + b[:v_ch]
    value = jnp.maximum(value, 0.0).astype(jnp.bfloat16)    # (V, THW) == query (unpermuted)
    key = jnp.dot(w[v_ch:], x, preferred_element_type=jnp.float32) + b[v_ch:]
    key = jnp.maximum(key, 0.0).astype(jnp.bfloat16)        # (K, THW)

    if val_ref is not None:
        val_ref[0] = value                                  # bf16 lane-dense tile

    # sim[v, k] += sum_hw value[v, hw] * key[k, hw]
    sim_acc[...] += jax.lax.dot_general(
        value, key, (((1,), (1,)), ((), ())),
        preferred_element_type=jnp.float32)                 # (V, K)

    @pl.when(t == pl.num_programs(1) - 1)
    def _():
        s = sim_acc[...] * sm_scale                         # (h*w)^-0.5 scaling, as in the module
        s = s - jnp.max(s, axis=-1, keepdims=True)
        e = jnp.exp(s)
        p_ref[0] = (e / jnp.sum(e, axis=-1, keepdims=True)).astype(p_ref.dtype)


def _ctx_recompute_kernel(p_ref, x_ref, wv_ref, bv_ref, ww_ref, bw_ref, o_ref):
    """Pass 2 (recompute path): recompute value per HW tile, apply sim, final 1x1 conv W."""
    x = x_ref[0]                                            # (Cin, THW) bf16
    value = jnp.dot(wv_ref[...], x, preferred_element_type=jnp.float32) + bv_ref[...]
    value = jnp.maximum(value, 0.0).astype(jnp.bfloat16)    # (V, THW)

    p = p_ref[0].astype(jnp.bfloat16)                       # (V, K)
    # ctx[k, hw] = sum_v p[v, k] * value[v, hw]
    ctx = jax.lax.dot_general(p, value, (((0,), (0,)), ((), ())),
                              preferred_element_type=jnp.float32)   # (K, THW)

    out = jnp.dot(ww_ref[...], ctx.astype(jnp.bfloat16),
                  preferred_element_type=jnp.float32) + bw_ref[...]  # (O, THW)
    o_ref[0] = out.astype(o_ref.dtype)


def _ctx_from_value_kernel(p_ref, val_ref, ww_ref, bw_ref, o_ref):
    """Pass 2 (materialized-value path): read stored bf16 value, apply sim, final conv W."""
    value = val_ref[0]                                      # (V, THW) bf16, ReLU already applied
    p = p_ref[0].astype(jnp.bfloat16)                       # (V, K)
    ctx = jax.lax.dot_general(p, value, (((0,), (0,)), ((), ())),
                              preferred_element_type=jnp.float32)   # (K, THW)
    out = jnp.dot(ww_ref[...], ctx.astype(jnp.bfloat16),
                  preferred_element_type=jnp.float32) + bw_ref[...]  # (O, THW)
    o_ref[0] = out.astype(o_ref.dtype)


# --------------------------------------------------------------------------- #
# Wrapper
# --------------------------------------------------------------------------- #

def self_attention_block(x, wv, bv, wk, bk, ww, bw, *, scale=1,
                         out_dtype=jnp.float32, materialize_value=None):
    """x: (B, Cin, H, W) f32 (NCHW). Channel-major weights: wv (V,Cin), wk (K,Cin),
    ww (O,K); biases (C, 1). Returns (B, O, H, W) of out_dtype."""
    if scale > 1:
        # TODO(synk): MaxPool2d(scale) + bilinear(align_corners=True) upsample path not implemented.
        raise NotImplementedError("scale > 1 not supported")
    B, Cin, H, W = x.shape
    HW = H * W
    V = wv.shape[0]
    K = wk.shape[0]
    O = ww.shape[0]
    sm_scale = float(HW) ** (-0.5)

    kind = _device_kind()
    if materialize_value is None:
        # v5e is compute-bound: store value in pass 1 rather than recomputing it in pass 2.
        materialize_value = ("v5 lite" in kind) or ("v5e" in kind)
    phys_vmem = _vmem_physical_bytes(kind)
    vmem_limit = (phys_vmem * 3) // 4               # 96 MiB on v5e/v6e, 48 MiB on v7x

    out_bytes = jnp.dtype(out_dtype).itemsize
    est = functools.partial(_vmem_estimate, cin=Cin, v=V, k=K, o=O,
                            materialize_value=materialize_value, out_bytes=out_bytes)
    thw = _pick_hw_tile(HW, int(vmem_limit * 0.8), est)
    T = HW // thw

    # Cast the big streams once in the wrapper: bf16 x and bf16 weights, f32 biases.
    x_c = x.astype(jnp.bfloat16).reshape(B, Cin, HW)        # channel-major; no transpose needed
    wvk = jnp.concatenate([wv, wk], axis=0).astype(jnp.bfloat16)   # fused value|key proj (V+K, Cin)
    bvk = jnp.concatenate([bv, bk], axis=0).astype(jnp.float32)    # (V+K, 1)
    wv_b = wv.astype(jnp.bfloat16)
    ww_b = ww.astype(jnp.bfloat16)
    bv_f = bv.astype(jnp.float32)
    bw_f = bw.astype(jnp.float32)

    # ---- pass 1: p = softmax((h*w)^-0.5 * value @ key^T), optionally stores value ----
    sim_kernel = functools.partial(_sim_kernel, v_ch=V, sm_scale=sm_scale)
    p_shape = jax.ShapeDtypeStruct((B, V, K), jnp.float32)
    if materialize_value:
        out_shape_1 = (p_shape, jax.ShapeDtypeStruct((B, V, HW), jnp.bfloat16))
        out_specs_1 = (pl.BlockSpec((1, V, K), lambda b, t: (b, 0, 0)),
                       pl.BlockSpec((1, V, thw), lambda b, t: (b, 0, t)))
    else:
        out_shape_1 = p_shape
        out_specs_1 = pl.BlockSpec((1, V, K), lambda b, t: (b, 0, 0))

    pass1 = pl.pallas_call(
        sim_kernel,
        out_shape=out_shape_1,
        grid_spec=pltpu.PrefetchScalarGridSpec(
            num_scalar_prefetch=0,
            grid=(B, T),
            in_specs=[
                pl.BlockSpec((1, Cin, thw), lambda b, t: (b, 0, t)),
                pl.BlockSpec((V + K, Cin), lambda b, t: (0, 0)),
                pl.BlockSpec((V + K, 1), lambda b, t: (0, 0)),
            ],
            out_specs=out_specs_1,
            scratch_shapes=[pltpu.VMEM((V, K), jnp.float32)],
        ),
        compiler_params=pltpu.CompilerParams(
            dimension_semantics=("parallel", "arbitrary"),
            vmem_limit_bytes=vmem_limit),
    )
    if materialize_value:
        p, value_c = pass1(x_c, wvk, bvk)
    else:
        p = pass1(x_c, wvk, bvk)

    # ---- pass 2: context + final 1x1 conv, written lane-dense as (O, THW) tiles ----
    ctx_params = pltpu.CompilerParams(
        dimension_semantics=("parallel", "parallel"),
        vmem_limit_bytes=vmem_limit)
    if materialize_value:
        out = pl.pallas_call(
            _ctx_from_value_kernel,
            out_shape=jax.ShapeDtypeStruct((B, O, HW), out_dtype),
            grid_spec=pltpu.PrefetchScalarGridSpec(
                num_scalar_prefetch=0,
                grid=(B, T),
                in_specs=[
                    pl.BlockSpec((1, V, K), lambda b, t: (b, 0, 0)),
                    pl.BlockSpec((1, V, thw), lambda b, t: (b, 0, t)),
                    pl.BlockSpec((O, K), lambda b, t: (0, 0)),
                    pl.BlockSpec((O, 1), lambda b, t: (0, 0)),
                ],
                out_specs=pl.BlockSpec((1, O, thw), lambda b, t: (b, 0, t)),
            ),
            compiler_params=ctx_params,
        )(p, value_c, ww_b, bw_f)
    else:
        out = pl.pallas_call(
            _ctx_recompute_kernel,
            out_shape=jax.ShapeDtypeStruct((B, O, HW), out_dtype),
            grid_spec=pltpu.PrefetchScalarGridSpec(
                num_scalar_prefetch=0,
                grid=(B, T),
                in_specs=[
                    pl.BlockSpec((1, V, K), lambda b, t: (b, 0, 0)),
                    pl.BlockSpec((1, Cin, thw), lambda b, t: (b, 0, t)),
                    pl.BlockSpec((V, Cin), lambda b, t: (0, 0)),
                    pl.BlockSpec((V, 1), lambda b, t: (0, 0)),
                    pl.BlockSpec((O, K), lambda b, t: (0, 0)),
                    pl.BlockSpec((O, 1), lambda b, t: (0, 0)),
                ],
                out_specs=pl.BlockSpec((1, O, thw), lambda b, t: (b, 0, t)),
            ),
            compiler_params=ctx_params,
        )(p, x_c, wv_b, bv_f, ww_b, bw_f)

    return out.reshape(B, O, H, W)                 # channel-major -> NCHW, no transpose


# --------------------------------------------------------------------------- #
# Params / reference / test
# --------------------------------------------------------------------------- #

def _init_params(key, in_channels, key_channels, value_channels, out_channels,
                 *, zero_init_w=True):
    """Channel-major params. BN (eval mode, fresh stats: gamma=1, beta=0, mean=0,
    var=1, eps=1e-5) folded into the 1x1-conv weight/bias. The module zero-inits
    the W conv; pass zero_init_w=False to exercise the full attention path in tests."""
    kv_w, kv_b, kk_w, kk_b, kw_w, kw_b = jax.random.split(key, 6)
    eps = 1e-5
    bn_scale = 1.0 / jnp.sqrt(1.0 + eps)

    wv = jax.random.normal(kv_w, (value_channels, in_channels), jnp.float32) * 0.1 * bn_scale
    bv = jax.random.normal(kv_b, (value_channels, 1), jnp.float32) * 0.1 * bn_scale
    wk = jax.random.normal(kk_w, (key_channels, in_channels), jnp.float32) * 0.1 * bn_scale
    bk = jax.random.normal(kk_b, (key_channels, 1), jnp.float32) * 0.1 * bn_scale

    if zero_init_w:
        ww = jnp.zeros((out_channels, key_channels), jnp.float32)
        bw = jnp.zeros((out_channels, 1), jnp.float32)
    else:
        ww = jax.random.normal(kw_w, (out_channels, key_channels), jnp.float32) * 0.1
        bw = jax.random.normal(kw_b, (out_channels, 1), jnp.float32) * 0.1
    return wv, bv, wk, bk, ww, bw


def _reference(x, wv, bv, wk, bk, ww, bw, *, mirror_bf16=True):
    """Plain-JAX reference of the PyTorch forward. mirror_bf16=True casts matmul
    operands to bf16 (f32 accumulation), matching the kernel's MXU precision."""
    B, Cin, H, W = x.shape
    HW = H * W
    cast = (lambda a: a.astype(jnp.bfloat16)) if mirror_bf16 else (lambda a: a)
    f32 = jnp.float32
    xc = x.reshape(B, Cin, HW)

    value = jnp.maximum(jnp.einsum("vc,bcs->bvs", cast(wv), cast(xc),
                                   preferred_element_type=f32) + bv, 0.0)   # (B, V, HW)
    key = jnp.maximum(jnp.einsum("kc,bcs->bks", cast(wk), cast(xc),
                                 preferred_element_type=f32) + bk, 0.0)     # (B, K, HW)
    sim = jnp.einsum("bvs,bks->bvk", cast(value), cast(key),
                     preferred_element_type=f32) * (HW ** -0.5)             # query = value (unpermuted)
    p = jax.nn.softmax(sim, axis=-1)
    ctx = jnp.einsum("bvk,bvs->bks", cast(p), cast(value),
                     preferred_element_type=f32)                            # (B, K, HW)
    out = jnp.einsum("ok,bks->bos", cast(ww), cast(ctx),
                     preferred_element_type=f32) + bw                       # (B, O, HW)
    return out.reshape(B, ww.shape[0], H, W)


if __name__ == "__main__":
    # Small shapes: batch=2, in_channels=4, H=W=16, key_channels=8, value_channels=8
    B, Cin, H, W = 2, 4, 16, 16
    key_channels, value_channels = 8, 8
    out_channels = Cin  # out_channels=None -> in_channels

    root = jax.random.PRNGKey(0)
    k_x, k_p = jax.random.split(root)
    x = jax.random.normal(k_x, (B, Cin, H, W), jnp.float32)

    # NOTE: the module zero-inits W (output would be identically zero); the test uses a
    # nonzero W conv so the value/key/softmax/context path is actually validated.
    params = _init_params(k_p, Cin, key_channels, value_channels, out_channels,
                          zero_init_w=False)

    ref = _reference(x, *params, mirror_bf16=True)
    assert float(jnp.max(jnp.abs(ref))) > 1e-3, "vacuous test: reference is ~zero"

    # Exercise both pass-2 variants (recompute and materialized-value) regardless of
    # which TPU generation the test runs on.
    for mat in (False, True):
        out = self_attention_block(x, *params, scale=1, materialize_value=mat)
        out = jax.block_until_ready(out)
        assert out.shape == (B, out_channels, H, W), out.shape
        max_err = float(jnp.max(jnp.abs(out - ref)))
        assert jnp.allclose(out, ref, atol=5e-3, rtol=5e-3), (
            f"mismatch vs reference (materialize_value={mat}, max err {max_err})")

    # bf16 output option: just check it compiles, runs, and is finite.
    out_bf16 = self_attention_block(x, *params, scale=1, out_dtype=jnp.bfloat16)
    out_bf16 = jax.block_until_ready(out_bf16)
    assert out_bf16.shape == (B, out_channels, H, W)
    assert bool(jnp.all(jnp.isfinite(out_bf16.astype(jnp.float32))))

    print("KERNEL_OK")
</pallas_src>

<mosaic_0001>
module attributes {stable_mosaic.version = 11 : i64} {
  func.func @_sim_kernel(%arg0: i32, %arg1: i32, %arg2: memref<1x4x256xbf16, #tpu.memory_space<vmem>>, %arg3: memref<16x4xbf16, #tpu.memory_space<vmem>>, %arg4: memref<16x1xf32, #tpu.memory_space<vmem>>, %arg5: memref<1x8x8xf32, #tpu.memory_space<vmem>>, %arg6: memref<8x8xf32, #tpu.memory_space<vmem>>) attributes {dimension_semantics = [#tpu.dimension_semantics<parallel>, #tpu.dimension_semantics<arbitrary>], iteration_bounds = array<i64: 2, 1>, scalar_prefetch = 0 : i64, scratch_operands = 1 : i64, tpu.core_type = #tpu.core_type<tc>, window_params = [{transform_indices = @transform_0, window_bounds = array<i64: 1, 4, 256>}, {pipeline_mode = #tpu.pipeline_mode<synchronous>, transform_indices = @transform_1, window_bounds = array<i64: 16, 4>}, {pipeline_mode = #tpu.pipeline_mode<synchronous>, transform_indices = @transform_2, window_bounds = array<i64: 16, 1>}, {transform_indices = @transform_3, window_bounds = array<i64: 1, 8, 8>}]} {
    %c0_i32 = arith.constant 0 : i32
    %0 = arith.cmpi eq, %arg1, %c0_i32 : i32
    %1 = arith.extui %0 : i1 to i32
    %c0_i32_0 = arith.constant 0 : i32
    %2 = arith.cmpi ne, %1, %c0_i32_0 : i32
    scf.if %2 {
      %cst_17 = arith.constant 0.000000e+00 : f32
      %30 = vector.broadcast %cst_17 : f32 to vector<8x8xf32>
      %c0_18 = arith.constant 0 : index
      %c0_19 = arith.constant 0 : index
      %31 = vector.load %arg6[%c0_18, %c0_19] : memref<8x8xf32, #tpu.memory_space<vmem>>, vector<8x8xf32>
      tpu.vector_store %arg6[%c0_18, %c0_19], %30 {strides = array<i32>} : memref<8x8xf32, #tpu.memory_space<vmem>>, vector<8x8xf32>,
    } else {
    }
    %c0 = arith.constant 0 : index
    %c0_1 = arith.constant 0 : index
    %c0_2 = arith.constant 0 : index
    %3 = vector.load %arg2[%c0, %c0_1, %c0_2] : memref<1x4x256xbf16, #tpu.memory_space<vmem>>, vector<1x4x256xbf16>
    %4 = vector.shape_cast %3 : vector<1x4x256xbf16> to vector<4x256xbf16>
    %c0_3 = arith.constant 0 : index
    %c0_4 = arith.constant 0 : index
    %5 = vector.load %arg3[%c0_3, %c0_4] : memref<16x4xbf16, #tpu.memory_space<vmem>>, vector<16x4xbf16>
    %c0_5 = arith.constant 0 : index
    %c0_6 = arith.constant 0 : index
    %6 = vector.load %arg4[%c0_5, %c0_6] : memref<16x1xf32, #tpu.memory_space<vmem>>, vector<16x1xf32>
    %7 = vector.extract_strided_slice %5 {offsets = [0, 0], sizes = [8, 4], strides = [1, 1]} : vector<16x4xbf16> to vector<8x4xbf16>
    %cst = arith.constant dense<0.000000e+00> : vector<8x256xf32>
    %8 = tpu.matmul %7, %4, %cst {dimension_numbers = #tpu.dot_dimension_numbers<[1], [0], [0], [1], [0, 0, 1, 1], [], []>} : vector<8x4xbf16>, vector<4x256xbf16>, vector<8x256xf32> -> vector<8x256xf32>
    %9 = vector.extract_strided_slice %6 {offsets = [0, 0], sizes = [8, 1], strides = [1, 1]} : vector<16x1xf32> to vector<8x1xf32>
    %10 = vector.broadcast %9 : vector<8x1xf32> to vector<8x256xf32>
    %11 = arith.addf %8, %10 : vector<8x256xf32>
    %cst_7 = arith.constant 0.000000e+00 : f32
    %12 = vector.broadcast %cst_7 : f32 to vector<8x256xf32>
    %13 = arith.maximumf %11, %12 : vector<8x256xf32>
    %14 = arith.truncf %13 : vector<8x256xf32> to vector<8x256xbf16>
    %15 = vector.extract_strided_slice %5 {offsets = [8, 0], sizes = [8, 4], strides = [1, 1]} : vector<16x4xbf16> to vector<8x4xbf16>
    %cst_8 = arith.constant dense<0.000000e+00> : vector<8x256xf32>
    %16 = tpu.matmul %15, %4, %cst_8 {dimension_numbers = #tpu.dot_dimension_numbers<[1], [0], [0], [1], [0, 0, 1, 1], [], []>} : vector<8x4xbf16>, vector<4x256xbf16>, vector<8x256xf32> -> vector<8x256xf32>
    %17 = vector.extract_strided_slice %6 {offsets = [8, 0], sizes = [8, 1], strides = [1, 1]} : vector<16x1xf32> to vector<8x1xf32>
    %18 = vector.broadcast %17 : vector<8x1xf32> to vector<8x256xf32>
    %19 = arith.addf %16, %18 : vector<8x256xf32>
    %cst_9 = arith.constant 0.000000e+00 : f32
    %20 = vector.broadcast %cst_9 : f32 to vector<8x256xf32>
    %21 = arith.maximumf %19, %20 : vector<8x256xf32>
    %22 = arith.truncf %21 : vector<8x256xf32> to vector<8x256xbf16>
    %c0_10 = arith.constant 0 : index
    %c0_11 = arith.constant 0 : index
    %23 = vector.load %arg6[%c0_10, %c0_11] : memref<8x8xf32, #tpu.memory_space<vmem>>, vector<8x8xf32>
    %cst_12 = arith.constant dense<0.000000e+00> : vector<8x8xf32>
    %24 = tpu.matmul %14, %22, %cst_12 {dimension_numbers = #tpu.dot_dimension_numbers<[1], [1], [0], [0], [0, 0, 1, 0], [], []>} : vector<8x256xbf16>, vector<8x256xbf16>, vector<8x8xf32> -> vector<8x8xf32>
    %25 = arith.addf %23, %24 : vector<8x8xf32>
    %c0_13 = arith.constant 0 : index
    %c0_14 = arith.constant 0 : index
    %26 = vector.load %arg6[%c0_13, %c0_14] : memref<8x8xf32, #tpu.memory_space<vmem>>, vector<8x8xf32>
    tpu.vector_store %arg6[%c0_13, %c0_14], %25 {strides = array<i32>} : memref<8x8xf32, #tpu.memory_space<vmem>>, vector<8x8xf32>,
    %c0_i32_15 = arith.constant 0 : i32
    %27 = arith.cmpi eq, %arg1, %c0_i32_15 : i32
    %28 = arith.extui %27 : i1 to i32
    %c0_i32_16 = arith.constant 0 : i32
    %29 = arith.cmpi ne, %28, %c0_i32_16 : i32
    scf.if %29 {
      %c0_17 = arith.constant 0 : index
      %c0_18 = arith.constant 0 : index
      %30 = vector.load %arg6[%c0_17, %c0_18] : memref<8x8xf32, #tpu.memory_space<vmem>>, vector<8x8xf32>
      %cst_19 = arith.constant 6.250000e-02 : f32
      %31 = vector.broadcast %cst_19 : f32 to vector<8x8xf32>
      %32 = arith.mulf %30, %31 : vector<8x8xf32>
      %cst_20 = arith.constant dense<0xFF800000> : vector<8xf32>
      %33 = vector.multi_reduction <maximumf>, %32, %cst_20 [1] : vector<8x8xf32> to vector<8xf32>
      %34 = vector.shape_cast %33 : vector<8xf32> to vector<8x1xf32>
      %35 = vector.broadcast %34 : vector<8x1xf32> to vector<8x8xf32>
      %36 = arith.subf %32, %35 : vector<8x8xf32>
      %37 = math.exp %36 : vector<8x8xf32>
      %cst_21 = arith.constant dense<0.000000e+00> : vector<8xf32>
      %38 = vector.multi_reduction <add>, %37, %cst_21 [1] : vector<8x8xf32> to vector<8xf32>
      %39 = vector.shape_cast %38 : vector<8xf32> to vector<8x1xf32>
      %40 = vector.broadcast %39 : vector<8x1xf32> to vector<8x8xf32>
      %41 = arith.divf %37, %40 : vector<8x8xf32>
      %c0_22 = arith.constant 0 : index
      %c0_23 = arith.constant 0 : index
      %c0_24 = arith.constant 0 : index
      %42 = vector.load %arg5[%c0_22, %c0_23, %c0_24] : memref<1x8x8xf32, #tpu.memory_space<vmem>>, vector<1x8x8xf32>
      %43 = vector.shape_cast %42 : vector<1x8x8xf32> to vector<8x8xf32>
      %44 = vector.shape_cast %41 : vector<8x8xf32> to vector<1x8x8xf32>
      tpu.vector_store %arg5[%c0_22, %c0_23, %c0_24], %44 {strides = array<i32>} : memref<1x8x8xf32, #tpu.memory_space<vmem>>, vector<1x8x8xf32>,
    } else {
    }
    return
  }
  func.func @transform_0(%arg0: i32, %arg1: i32) -> (i32, i32, i32) {
    %c0_i32 = arith.constant 0 : i32
    %c0_i32_0 = arith.constant 0 : i32
    return %arg0, %c0_i32, %arg1 : i32, i32, i32
  }
  func.func @transform_1(%arg0: i32, %arg1: i32) -> (i32, i32) {
    %c0_i32 = arith.constant 0 : i32
    %c0_i32_0 = arith.constant 0 : i32
    %c0_i32_1 = arith.constant 0 : i32
    return %c0_i32, %c0_i32_0 : i32, i32
  }
  func.func @transform_2(%arg0: i32, %arg1: i32) -> (i32, i32) {
    %c0_i32 = arith.constant 0 : i32
    %c0_i32_0 = arith.constant 0 : i32
    %c0_i32_1 = arith.constant 0 : i32
    return %c0_i32, %c0_i32_0 : i32, i32
  }
  func.func @transform_3(%arg0: i32, %arg1: i32) -> (i32, i32, i32) {
    %c0_i32 = arith.constant 0 : i32
    %c0_i32_0 = arith.constant 0 : i32
    %c0_i32_1 = arith.constant 0 : i32
    return %arg0, %c0_i32, %c0_i32_0 : i32, i32, i32
  }
}

</mosaic_0001>

<llo_original>
// kernel: tpu_custom_call.1
$region0: #{tpu_custom_call.1}
  #allocation0 [shape = 'u32[]', space=smem, size = 0x4, offset = 0x4, fixed_abs, tag = 'smem constant byte address 0x4 - core index']
  #allocation1 [shape = 'u32[144,128]{1,0:T(1,128)}', space=vmem, size = 0x12000, scoped, tag = 'internal scratch']
  #allocation2 [shape = 'f32[8,8]{1,0:T(8,128)}', space=vmem, size = 0x1000, scoped, tag = 'scratch operand']
  %s0 = inlined_call_operand.vmem [shape: bf16[2,4,256], index: 0, kind: input, shape index: {}]
  %s1 = inlined_call_operand.vmem [shape: bf16[16,4], index: 1, kind: input, shape index: {}]
  %s2 = inlined_call_operand.vmem [shape: f32[16,1], index: 2, kind: input, shape index: {}]
  %s3 = inlined_call_operand.hbm [shape: f32[2,8,8], index: 3, kind: output, shape index: {}]
  %s4 = sld [smem:[#allocation0]]
  $region53: #{tpu_custom_call.1} parent=0
    _
  %s6 = ssub.s32 1, %s4
  %s7 = scalar_select 0, %s6, %s4
  $region1: #{tpu_custom_call.1} parent=0
    #allocation3 [shape = 'u8[8192]{0}', space=vmem, size = 0x2000, scoped, tag = 'output window, operand 0']
    #allocation4 [shape = 's32[2]{0}', space=sflag, size = 0x8, scoped, tag = 'scoped memory for tpu_custom_call.1']
    %8 = vsyncpa [#allocation4], 0
    %s9 = scalar_lea.sflag [#allocation4], 1
    %10 = vsyncpa %s9, 0
    loop: start=0, step=1, limit=4
    $region2: #{tpu_custom_call.1} parent=1 // loop_pre_header
      _
    $region3: #{tpu_custom_call.1} parent=1 // loop_header
      %s12 = sphi 0, %s16
      %p13 = scmp.ge.s32.totalorder %s12, 4
      %s19 = sphi 0, %s31
      %s20 = sphi 0, %s27
      %s21 = sphi 0, %s19
      %s22 = sphi 0, %s20
      %s23 = sphi 0, %s21
      %s24 = sphi 0, %s22
      %s36 = sphi 0, %s38
      %s39 = sphi 0, %s36
      %s40 = sphi 0, %s39
      %s56 = sphi 0, %s40
      %s60 = sphi 0, %s60
      %s62 = sphi 0, %s60
      %s63 = sphi 0, %s62
      %s77 = sphi 0, %s63
      %s81 = sphi 0, %s81
      %s83 = sphi 0, %s81
      %s84 = sphi 0, %s83
      %s98 = sphi 0, %s84
      %s104 = sphi 0, %s106
      %s107 = sphi 0, %s104
      %s108 = sphi 0, %s107
      %s124 = sphi 0, %s108
    $region4: #{tpu_custom_call.1} parent=1 // loop_header_branch
      %15 = sbr.rel (%p13) target = $region8
    $region5: #{tpu_custom_call.1} parent=1 // loop_body
      %s17 = ssub.s32 %s12, 1
      %s18 = ssub.s32 %s12, 2
      %s25 = sadd.s32 1, %s20
      %p26 = scmp.ge.s32.totalorder %s25, 1
      %s27 = scalar_select %p26, 0, %s25
      %s28 = sadd.s32 1, %s19
      %s29 = scalar_select %p26, %s28, %s19
      %p30 = scmp.ge.s32.totalorder %s29, 2
      %s31 = scalar_select %p30, 0, %s29
      %s32 = ssub.s32 %s19, %s31
      %s33 = ssub.s32 %s20, %s27
      %s34 = sor.u32 %s32, %s33
      %p35 = scmp.eq.s32.totalorder %s34, 0
      %s37 = sadd.s32 %s36, 1
      %s38 = scalar_select %p35, %s36, %s37
      %p41 = pneg %p35
      %p42 = scmp.eq.s32.totalorder %s12, 1
      %p43 = por %p41, %p42
      %p44 = scmp.ne.s32.totalorder %s36, %s39
      %p45 = scmp.eq.s32.totalorder %s12, 0
      %p46 = por %p44, %p45
      %p47 = scmp.ne.s32.totalorder %s36, %s39
      %p48 = scmp.eq.s32.totalorder %s17, 1
      %p49 = por %p47, %p48
      %p50 = scmp.ne.s32.totalorder %s39, %s40
      %p51 = scmp.eq.s32.totalorder %s17, 0
      %p52 = por %p50, %p51
      %p53 = scmp.ne.s32.totalorder %s39, %s40
      %p54 = scmp.eq.s32.totalorder %s18, 1
      %p55 = por %p53, %p54
      %p57 = scmp.ne.s32.totalorder %s40, %s56
      %p58 = scmp.eq.s32.totalorder %s18, 0
      %p59 = por %p57, %p58
      %s61 = sadd.s32 %s60, 1
      %p64 = scmp.eq.s32.totalorder %s12, 1
      %p65 = scmp.ne.s32.totalorder %s60, %s62
      %p66 = scmp.eq.s32.totalorder %s12, 0
      %p67 = por %p65, %p66
      %p68 = scmp.ne.s32.totalorder %s60, %s62
      %p69 = scmp.eq.s32.totalorder %s17, 1
      %p70 = por %p68, %p69
      %p71 = scmp.ne.s32.totalorder %s62, %s63
      %p72 = scmp.eq.s32.totalorder %s17, 0
      %p73 = por %p71, %p72
      %p74 = scmp.ne.s32.totalorder %s62, %s63
      %p75 = scmp.eq.s32.totalorder %s18, 1
      %p76 = por %p74, %p75
      %p78 = scmp.ne.s32.totalorder %s63, %s77
      %p79 = scmp.eq.s32.totalorder %s18, 0
      %p80 = por %p78, %p79
      %s82 = sadd.s32 %s81, 1
      %p85 = scmp.eq.s32.totalorder %s12, 1
      %p86 = scmp.ne.s32.totalorder %s81, %s83
      %p87 = scmp.eq.s32.totalorder %s12, 0
      %p88 = por %p86, %p87
      %p89 = scmp.ne.s32.totalorder %s81, %s83
      %p90 = scmp.eq.s32.totalorder %s17, 1
      %p91 = por %p89, %p90
      %p92 = scmp.ne.s32.totalorder %s83, %s84
      %p93 = scmp.eq.s32.totalorder %s17, 0
      %p94 = por %p92, %p93
      %p95 = scmp.ne.s32.totalorder %s83, %s84
      %p96 = scmp.eq.s32.totalorder %s18, 1
      %p97 = por %p95, %p96
      %p99 = scmp.ne.s32.totalorder %s84, %s98
      %p100 = scmp.eq.s32.totalorder %s18, 0
      %p101 = por %p99, %p100
      %s102 = ssub.s32 %s19, %s31
      %p103 = scmp.eq.s32.totalorder %s102, 0
      %s105 = sadd.s32 %s104, 1
      %s106 = scalar_select %p103, %s104, %s105
      %p109 = pneg %p103
      %p110 = scmp.eq.s32.totalorder %s12, 1
      %p111 = por %p109, %p110
      %p112 = scmp.ne.s32.totalorder %s104, %s107
      %p113 = scmp.eq.s32.totalorder %s12, 0
      %p114 = por %p112, %p113
      %p115 = scmp.ne.s32.totalorder %s104, %s107
      %p116 = scmp.eq.s32.totalorder %s17, 1
      %p117 = por %p115, %p116
      %p118 = scmp.ne.s32.totalorder %s107, %s108
      %p119 = scmp.eq.s32.totalorder %s17, 0
      %p120 = por %p118, %p119
      %p121 = scmp.ne.s32.totalorder %s107, %s108
      %p122 = scmp.eq.s32.totalorder %s18, 1
      %p123 = por %p121, %p122
      %p125 = scmp.ne.s32.totalorder %s108, %s124
      %p126 = scmp.eq.s32.totalorder %s18, 0
      %p127 = por %p125, %p126
      %p128 = scmp.le.s32.totalorder 1, %s12
      %p129 = scmp.lt.s32.totalorder %s12, 3
      %p130 = pnand %p128, %p129
      %p131 = pneg %p130
      // Predicated region
      $region9: #{tpu_custom_call.1} parent=5 // pred_check
        _
      $region10: #{tpu_custom_call.1} parent=5 // pred_check_branch
        %133 = sbr.rel (%p130) target = $region12
      $region11: #{tpu_custom_call.1} parent=5 // pred_region
        %s134 = ssub.s32 %s12, 1
        // Predicated region
        $region13: #{tpu_custom_call.1} parent=11 // pred_check
          %p135 = pneg %p73
        $region14: #{tpu_custom_call.1} parent=11 // pred_check_branch
          %137 = sbr.rel (%p135) target = $region16
        $region15: #{tpu_custom_call.1} parent=11 // pred_region
          _
        $region16: #{tpu_custom_call.1} parent=11 // pred_fallthru
          _
        // Predicated region
        $region17: #{tpu_custom_call.1} parent=11 // pred_check
          %p138 = pneg %p94
        $region18: #{tpu_custom_call.1} parent=11 // pred_check_branch
          %140 = sbr.rel (%p138) target = $region20
        $region19: #{tpu_custom_call.1} parent=11 // pred_region
          _
        $region20: #{tpu_custom_call.1} parent=11 // pred_fallthru
          _
      $region12: #{tpu_custom_call.1} parent=5 // pred_fallthru
        _
      %p141 = scmp.lt.s32.totalorder %s12, 2
      // Predicated region
      $region21: #{tpu_custom_call.1} parent=5 // pred_check
        %p142 = pneg %p141
      $region22: #{tpu_custom_call.1} parent=5 // pred_check_branch
        %144 = sbr.rel (%p142) target = $region24
      $region23: #{tpu_custom_call.1} parent=5 // pred_region
        // Predicated region
        $region25: #{tpu_custom_call.1} parent=23 // pred_check
          %p145 = pneg %p46
        $region26: #{tpu_custom_call.1} parent=23 // pred_check_branch
          %147 = sbr.rel (%p145) target = $region28
        $region27: #{tpu_custom_call.1} parent=23 // pred_region
          %s148 = smul.u32 2, %s20
          %p149 = scmp.lt.s32.totalorder %s19, 1
          %s150 = scalar_select %p149, %s19, 1
          %p151 = scmp.lt.s32.totalorder %s148, 1
          %s152 = scalar_select %p151, %s148, 1
          %s153 = smul.addr %s150, 2
          %s154 = sadd.s32 %s152, %s153
          %s155 = smul.addr %s154, 2
          %s156 = scalar_lea.vmem %s0, %s155
          %s157 = smul.u32 2, %s20
        $region28: #{tpu_custom_call.1} parent=23 // pred_fallthru
          _
      $region24: #{tpu_custom_call.1} parent=5 // pred_fallthru
        _
      %p158 = scmp.le.s32.totalorder 1, %s12
      %p159 = scmp.lt.s32.totalorder %s12, 3
      %p160 = pnand %p158, %p159
      %p161 = pneg %p160
      // Predicated region
      $region29: #{tpu_custom_call.1} parent=5 // pred_check
        _
      $region30: #{tpu_custom_call.1} parent=5 // pred_check_branch
        %163 = sbr.rel (%p160) target = $region32
      $region31: #{tpu_custom_call.1} parent=5 // pred_region
        %s164 = ssub.s32 %s12, 1
        %s165 = smul.u32 2, %s22
        %p166 = scmp.lt.s32.totalorder %s21, 1
        %s167 = scalar_select %p166, %s21, 1
        %p168 = scmp.lt.s32.totalorder %s165, 1
        %s169 = scalar_select %p168, %s165, 1
        %s170 = smul.addr %s167, 2
        %s171 = sadd.s32 %s169, %s170
        %s172 = smul.addr %s171, 2
        %s173 = scalar_lea.vmem %s0, %s172
        %p174 = pneg %p52
        %p175 = pneg %p49
        %p176 = pneg %p73
        %p177 = pneg %p70
        %p178 = pneg %p94
        %p179 = pneg %p91
        %p180 = pneg %p120
        %p181 = pneg %p117
        %s182 = sand.u32 %s107, 1
        %s183 = scalar_lea.sflag [#allocation4], %s182
        %s184 = sand.u32 %s107, 1
        %s185 = smul.addr %s184, 8
        %s186 = scalar_lea.vmem [#allocation3], %s185
        %s187 = smul.u32 2, %s22
        %p188 = scmp.lt.s32.totalorder %s21, 1
        %s189 = scalar_select %p188, %s21, 1
        %p190 = scmp.lt.s32.totalorder %s187, 1
        %s191 = scalar_select %p190, %s187, 1
        %s192 = smul.addr %s189, 2
        %s193 = sadd.s32 %s191, %s192
        %s194 = smul.addr %s193, 2
        %s195 = scalar_lea.vmem %s0, %s194
        %s196 = smul.u32 2, %s22
        %p198 = scmp.eq.s32.totalorder %s22, 0
        // Predicated region
        $region33: #{tpu_custom_call.1} parent=31 // pred_check
          %p199 = pneg %p198
        $region34: #{tpu_custom_call.1} parent=31 // pred_check_branch
          %201 = sbr.rel (%p199) target = $region36
        $region35: #{tpu_custom_call.1} parent=31 // pred_region
          %vm202 = vcmask 64512
          %203 = vst.msk [vmem:[#allocation2] sm:$0xff] %vm202, 0.0
        $region36: #{tpu_custom_call.1} parent=31 // pred_fallthru
          _
        %v204 = vld [vmem:[%s195] sm:$0xf]
        %v205 = vld [vmem:[%s1] sm:$0xf]
        %v206 = vld [vmem:[%s1 + $0x4] sm:$0xf]
        %v207 = vld [vmem:[%s2] sm:$0xff]
        %v208 = vld [vmem:[%s2 + $0x8] sm:$0xff]
        %210 = vset.pattern.permute.xlu0 0
        %211 = vperm.xlu0 %210, %v207
        %v212 = vpop.permute.xlu0 %211
        %v216 = vunpack.c.l.s4 1983009808
        %v217 = vunpack.c.0.s8 %v216
        %v218 = vlaneseq
        %v219 = vshrl.u32 %v218, 7
        %v220 = vsub.s32 %v217, %v219
        %v221 = vrot.slane %v204, %v220
        %v222 = vcombine.high %v221, %v221
        %vm223 = vcmask 31744
        %v225 = vsel %vm223, %v205, 0
        %vm227 = vcmask 1041408
        %v229 = vsel %vm227, %v221, 0
        %v232 = vsel %vm227, %v222, 0
        %234 = vmatprep.subr.bf16.mxu0 0
        %235 = vmatpush1.bf16.msra.mxu0 0
        %236 = vmatprep.subr.bf16.mxu0 0
        %237 = vmatpush1.bf16.msra.mxu0 0
        %238 = vmatprep.subr.bf16.mxu0 0
        %239 = vmatpush1.bf16.msra.mxu0 0
        %240 = vmatprep.subr.bf16.mxu0 0
        %241 = vmatpush1.bf16.msra.mxu0 0
        %242 = vmatprep.subr.bf16.mxu0 0
        %243 = vmatpush1.bf16.msra.mxu0 0
        %244 = vmatprep.subr.bf16.mxu0 0
        %245 = vmatpush1.bf16.msra.mxu0 0
        %246 = vmatprep.subr.bf16.mxu0 0
        %247 = vmatpush1.bf16.msra.mxu0 0
        %248 = vmatprep.subr.bf16.mxu0 %v232
        %249 = vmatpush1.bf16.msra.mxu0 %v229
        %250 = vmatprep.subr.bf16.mxu0 0
        %251 = vmatpush2.bf16.msra.mxu0 0
        %252 = vmatprep.subr.bf16.mxu0 0
        %253 = vmatpush2.bf16.msra.mxu0 0
        %254 = vmatprep.subr.bf16.mxu0 0
        %255 = vmatpush2.bf16.msra.mxu0 0
        %256 = vmatprep.subr.bf16.mxu0 0
        %257 = vmatpush2.bf16.msra.mxu0 0
        %258 = vmatprep.subr.bf16.mxu0 0
        %259 = vmatpush2.bf16.msra.mxu0 0
        %260 = vmatprep.subr.bf16.mxu0 0
        %261 = vmatpush2.bf16.msra.mxu0 0
        %262 = vmatprep.subr.bf16.mxu0 0
        %263 = vmatpush2.bf16.msra.mxu0 0
        %264 = vmatprep.subr.bf16.mxu0 0
        %265 = vmatpush2.bf16.msra.mxu0 0
        %266 = vmatprep.mubr.bf16.mxu0 0
        %267 = vmatmul.mubr.bf16.gmra.mxu0 %v225
        %v268 = vpop.f32.mrf.mxu0
        %v269 = vadd.f32 %v212, %v268
        %v270 = vpop.f32.mrf.mxu0
        %v271 = vadd.f32 %v212, %v270
        %v272 = vpop.f32.mrf.mxu0
        %v273 = vpop.f32.mrf.mxu0
        %274 = vdwg.mxu0
        %v275 = vmax.f32 %v269, 0.0
        %v276 = vmax.f32 %v271, 0.0
        %v277 = vpack.c.bf16 %v275, %v275
        %v278 = vpack.c.bf16 %v276, %v276
        %280 = vset.pattern.permute.xlu0 0
        %281 = vperm.xlu0 %280, %v208
        %v282 = vpop.permute.xlu0 %281
        %v285 = vsel %vm223, %v206, 0
        %287 = vmatprep.subr.bf16.mxu0 0
        %288 = vmatpush1.bf16.msra.mxu0 0
        %289 = vmatprep.subr.bf16.mxu0 0
        %290 = vmatpush1.bf16.msra.mxu0 0
        %291 = vmatprep.subr.bf16.mxu0 0
        %292 = vmatpush1.bf16.msra.mxu0 0
        %293 = vmatprep.subr.bf16.mxu0 0
        %294 = vmatpush1.bf16.msra.mxu0 0
        %295 = vmatprep.subr.bf16.mxu0 0
        %296 = vmatpush1.bf16.msra.mxu0 0
        %297 = vmatprep.subr.bf16.mxu0 0
        %298 = vmatpush1.bf16.msra.mxu0 0
        %299 = vmatprep.subr.bf16.mxu0 0
        %300 = vmatpush1.bf16.msra.mxu0 0
        %301 = vmatprep.subr.bf16.mxu0 %v232
        %302 = vmatpush1.bf16.msra.mxu0 %v229
        %303 = vmatprep.subr.bf16.mxu0 0
        %304 = vmatpush2.bf16.msra.mxu0 0
        %305 = vmatprep.subr.bf16.mxu0 0
        %306 = vmatpush2.bf16.msra.mxu0 0
        %307 = vmatprep.subr.bf16.mxu0 0
        %308 = vmatpush2.bf16.msra.mxu0 0
        %309 = vmatprep.subr.bf16.mxu0 0
        %310 = vmatpush2.bf16.msra.mxu0 0
        %311 = vmatprep.subr.bf16.mxu0 0
        %312 = vmatpush2.bf16.msra.mxu0 0
        %313 = vmatprep.subr.bf16.mxu0 0
        %314 = vmatpush2.bf16.msra.mxu0 0
        %315 = vmatprep.subr.bf16.mxu0 0
        %316 = vmatpush2.bf16.msra.mxu0 0
        %317 = vmatprep.subr.bf16.mxu0 0
        %318 = vmatpush2.bf16.msra.mxu0 0
        %319 = vmatprep.mubr.bf16.mxu0 0
        %320 = vmatmul.mubr.bf16.gmra.mxu0 %v285
        %v321 = vpop.f32.mrf.mxu0
        %v322 = vadd.f32 %v282, %v321
        %v323 = vpop.f32.mrf.mxu0
        %v324 = vadd.f32 %v282, %v323
        %v325 = vpop.f32.mrf.mxu0
        %v326 = vpop.f32.mrf.mxu0
        %327 = vdwg.mxu0
        %v328 = vmax.f32 %v322, 0.0
        %v329 = vmax.f32 %v324, 0.0
        %v330 = vpack.c.bf16 %v328, %v328
        %v331 = vpack.c.bf16 %v329, %v329
        %v332 = vld [vmem:[#allocation2] sm:$0xff]
        %333 = vmatprep.subr.bf16.mxu0 0
        %334 = vmatpush1.bf16.xpose.msra.mxu0 0
        %335 = vmatprep.subr.bf16.mxu0 0
        %336 = vmatpush1.bf16.xpose.msra.mxu0 0
        %337 = vmatprep.subr.bf16.mxu0 0
        %338 = vmatpush1.bf16.xpose.msra.mxu0 0
        %339 = vmatprep.subr.bf16.mxu0 0
        %340 = vmatpush1.bf16.xpose.msra.mxu0 0
        %341 = vmatprep.subr.bf16.mxu0 0
        %342 = vmatpush1.bf16.xpose.msra.mxu0 0
        %343 = vmatprep.subr.bf16.mxu0 0
        %344 = vmatpush1.bf16.xpose.msra.mxu0 0
        %345 = vmatprep.subr.bf16.mxu0 0
        %346 = vmatpush1.bf16.xpose.msra.mxu0 0
        %347 = vmatprep.subr.bf16.mxu0 %v331
        %348 = vmatpush1.bf16.xpose.msra.mxu0 %v330
        %349 = vmatprep.subr.bf16.mxu0 0
        %350 = vmatpush2.bf16.xpose.msra.mxu0 0
        %351 = vmatprep.subr.bf16.mxu0 0
        %352 = vmatpush2.bf16.xpose.msra.mxu0 0
        %353 = vmatprep.subr.bf16.mxu0 0
        %354 = vmatpush2.bf16.xpose.msra.mxu0 0
        %355 = vmatprep.subr.bf16.mxu0 0
        %356 = vmatpush2.bf16.xpose.msra.mxu0 0
        %357 = vmatprep.subr.bf16.mxu0 0
        %358 = vmatpush2.bf16.xpose.msra.mxu0 0
        %359 = vmatprep.subr.bf16.mxu0 0
        %360 = vmatpush2.bf16.xpose.msra.mxu0 0
        %361 = vmatprep.subr.bf16.mxu0 0
        %362 = vmatpush2.bf16.xpose.msra.mxu0 0
        %363 = vmatprep.subr.bf16.mxu0 0
        %364 = vmatpush2.bf16.xpose.msra.mxu0 0
        %365 = vmatprep.mubr.bf16.mxu0 %v278
        %366 = vmatmul.mubr.bf16.gmra.mxu0 %v277
        %v367 = vpop.f32.mrf.mxu0
        %v368 = vadd.f32 0.0, %v367
        %v369 = vpop.f32.mrf.mxu0
        %v370 = vpop.f32.mrf.mxu0
        %v371 = vpop.f32.mrf.mxu0
        %372 = vdwg.mxu0
        %v373 = vadd.f32 %v332, %v368
        %vm374 = vcmask 64512
        %375 = vst.msk [vmem:[#allocation2] sm:$0xff] %vm374, %v373
        // Predicated region
        $region37: #{tpu_custom_call.1} parent=31 // pred_check
          %p376 = pneg %p198
        $region38: #{tpu_custom_call.1} parent=31 // pred_check_branch
          %378 = sbr.rel (%p376) target = $region40
        $region39: #{tpu_custom_call.1} parent=31 // pred_region
          %v379 = vld [vmem:[#allocation2] sm:$0xff]
          %v380 = vmul.f32 %v379, 0.0625
          %v381 = vsel %vm374, %v380, -inf
          %382 = vmax.xlane.f32.xlu0 %v381
          %v383 = vpop.xlane.xlu0 %382
          %v384 = vsub.f32 %v380, %v383
          %v385 = vmul.f32 %v384, 1.442695
          %v386 = vpow.pop %v385
          %v387 = vsel %vm374, %v386, 0.0
          %388 = vadd.xlane.f32.xlu0 %v387
          %v389 = vpop.xlane.xlu0 %388
          %v390 = vrcp.pop %v389
          %v391 = vmul.f32 %v386, %v390
          %392 = vst.msk [vmem:[%s186] sm:$0xff] %vm374, %v391
        $region40: #{tpu_custom_call.1} parent=31 // pred_fallthru
          _
        %s393 = sand.u32 %s107, 1
        %s394 = scalar_lea.sflag [#allocation4], %s393
        %s395 = sand.u32 %s107, 1
        %s396 = smul.addr %s395, 8
        %s397 = scalar_lea.vmem [#allocation3], %s396
        // Predicated region
        $region41: #{tpu_custom_call.1} parent=31 // pred_check
          %p398 = pneg %p117
        $region42: #{tpu_custom_call.1} parent=31 // pred_check_branch
          %400 = sbr.rel (%p398) target = $region44
        $region43: #{tpu_custom_call.1} parent=31 // pred_region
          %s402 = ssub.s32 128, 128
          %403 = vsyncadd %s394, %s402
          %s404 = smul.addr %s21, 128
          %s405 = scalar_lea.hbm %s3, %s404
          %s407 = sshll.u32 %s397, 4
          %s408 = int_to_ptr.vmem [resolvable:$true] %s407
          %410 = dma.vmem_to_hbm [thread:$0]  %s408, 128, %s405, %s394
        $region44: #{tpu_custom_call.1} parent=31 // pred_fallthru
          _
      $region32: #{tpu_custom_call.1} parent=5 // pred_fallthru
        _
      %p411 = scmp.le.s32.totalorder 2, %s12
      // Predicated region
      $region45: #{tpu_custom_call.1} parent=5 // pred_check
        %p412 = pneg %p411
      $region46: #{tpu_custom_call.1} parent=5 // pred_check_branch
        %414 = sbr.rel (%p412) target = $region48
      $region47: #{tpu_custom_call.1} parent=5 // pred_region
        %s415 = ssub.s32 %s12, 2
        // Predicated region
        $region49: #{tpu_custom_call.1} parent=47 // pred_check
          %p416 = pneg %p123
        $region50: #{tpu_custom_call.1} parent=47 // pred_check_branch
          %418 = sbr.rel (%p416) target = $region52
        $region51: #{tpu_custom_call.1} parent=47 // pred_region
          %s419 = sand.u32 %s108, 1
          %s420 = scalar_lea.sflag [#allocation4], %s419
          %s421 = sand.u32 %s108, 1
          %s422 = smul.addr %s421, 8
          %s423 = scalar_lea.vmem [#allocation3], %s422
          %424 = dma.done %s420, 128
        $region52: #{tpu_custom_call.1} parent=47 // pred_fallthru
          _
      $region48: #{tpu_custom_call.1} parent=5 // pred_fallthru
        _
    $region6: #{tpu_custom_call.1} parent=1 // loop_footer
      %s16 = sadd.s32 1, %s12
    $region7: #{tpu_custom_call.1} parent=1 // loop_footer_branch
      %11 = sbr.rel target = $region3
    $region8: #{tpu_custom_call.1} parent=1 // loop_exit
      _
    %425 = vsyncpa [#allocation4], 1
    %s426 = scalar_lea.sflag [#allocation4], 1
    %427 = vsyncpa %s426, 1

</llo_original>
